<compile_context>
chip_gen: v5e
topology: v5e:2x2
jax: 0.10.0
libtpu: 0.0.40
codegen_flags: <defaults>
</compile_context>

<pallas_src>
import functools

import jax
import jax.numpy as jnp
from jax.experimental import pallas as pl
from jax.experimental.pallas import tpu as pltpu


# ----------------------------------------------------------------------------
# Fused kernel: LN(x_q), LN(x_kv), q/kv projections, per-head attention with
# TB-batched matmuls, direct per-head writeback.  One batch *block* per grid
# step; everything stays in VMEM.
# ----------------------------------------------------------------------------
def _cross_attention_kernel(xq_ref, xkv_ref, qg_ref, qb_ref, kvg_ref, kvb_ref,
                            wq_ref, bq_ref, wkv_ref, bkv_ref, o_ref,
                            *, num_heads, num_qk, num_v, normalize_kv):
    f32 = jnp.float32
    bf16 = jnp.bfloat16

    tb, n, dq = xq_ref.shape
    _, l, dkv = xkv_ref.shape
    cqk = num_qk // num_heads
    cv = num_v // num_heads

    def ln(x, g, b):
        mean = jnp.mean(x, axis=-1, keepdims=True)
        xc = x - mean
        var = jnp.mean(xc * xc, axis=-1, keepdims=True)   # biased, like torch LN
        return xc * jax.lax.rsqrt(var + 1e-5) * g + b

    # ---- LayerNorms + projections on the fused (TB*N) / (TB*L) row blocks ----
    xq = xq_ref[...].astype(f32).reshape(tb * n, dq)
    xq_n = ln(xq, qg_ref[...], qb_ref[...])

    xkv = xkv_ref[...].astype(f32).reshape(tb * l, dkv)
    xkv_n = ln(xkv, kvg_ref[...], kvb_ref[...]) if normalize_kv else xkv

    # q projection (dp_scale already folded into wq/bq): bf16 MXU, f32 acc.
    q = jnp.dot(xq_n.astype(bf16), wq_ref[...],
                preferred_element_type=f32) + bq_ref[...]        # (TB*N, num_qk)
    # fused k|v projection: a single matmul produces both.
    kv = jnp.dot(xkv_n.astype(bf16), wkv_ref[...],
                 preferred_element_type=f32) + bkv_ref[...]      # (TB*L, num_qk+num_v)

    q3 = q.astype(bf16).reshape(tb, n, num_qk)
    kv3 = kv.astype(bf16).reshape(tb, l, num_qk + num_v)
    k3 = kv3[:, :, :num_qk]
    v3 = kv3[:, :, num_qk:]

    # ---- attention: batched over the TB batch block, static unroll over heads,
    # each head stored straight into its output lane slice (no concat). ----
    for h in range(num_heads):
        qh = q3[:, :, h * cqk:(h + 1) * cqk]            # (TB, N, cqk)
        kh = k3[:, :, h * cqk:(h + 1) * cqk]            # (TB, L, cqk)
        vh = v3[:, :, h * cv:(h + 1) * cv]              # (TB, L, cv)
        s = jnp.einsum('bnc,blc->bnl', qh, kh,
                       preferred_element_type=f32)      # (TB, N, L) f32
        s = s - jnp.max(s, axis=-1, keepdims=True)
        p = jnp.exp(s)
        p = p * pl.reciprocal(jnp.sum(p, axis=-1, keepdims=True), approx=True)
        oh = jnp.einsum('bnl,blc->bnc', p.astype(bf16), vh,
                        preferred_element_type=f32)     # (TB, N, cv)
        o_ref[:, :, h * cv:(h + 1) * cv] = oh.astype(o_ref.dtype)


def _choose_batch_block(B, N, L, Dq, Dkv, num_qk, num_v,
                        target_rows=256, vmem_budget_bytes=24 << 20):
    """Largest divisor of B whose block (a) gives ~target_rows fused rows to the
    projection matmuls and (b) keeps the estimated f32 working set well under
    VMEM (conservative enough for v7x's 64 MiB)."""

    def footprint_bytes(tb):
        words = (2 * tb * N * Dq + 2 * tb * L * Dkv              # dbl-buffered input blocks
                 + tb * N * num_qk + tb * L * (num_qk + num_v)   # q / kv activations
                 + 2 * tb * N * L                                # score + prob (f32)
                 + 2 * tb * N * num_v)                           # dbl-buffered output block
        return 4 * words

    divisors = [d for d in range(1, B + 1) if B % d == 0]
    ok = [d for d in divisors
          if d * N <= target_rows and footprint_bytes(d) <= vmem_budget_bytes]
    tb = max(ok) if ok else 1
    # v7x has 2 TensorCores: prefer >=2 grid steps when the MXU row fill stays
    # reasonable (>=128 rows per step).
    if tb == B and B > 1:
        smaller = [d for d in ok if d < B and d * N >= 128]
        if smaller:
            tb = max(smaller)
    return tb


def fused_cross_attention(x_q, x_kv, prep, *, normalize_kv=True):
    B, N, Dq = x_q.shape
    _, L, Dkv = x_kv.shape
    num_heads = prep["num_heads"]
    num_qk = prep["num_qk"]
    num_v = prep["num_v"]
    assert num_qk % num_heads == 0 and num_v % num_heads == 0

    TB = _choose_batch_block(B, N, L, Dq, Dkv, num_qk, num_v)

    kern = functools.partial(
        _cross_attention_kernel,
        num_heads=num_heads, num_qk=num_qk, num_v=num_v,
        normalize_kv=normalize_kv)

    # Advisory cost hint for XLA's scheduler.
    flops = int(2 * B * (N * Dq * num_qk
                         + L * Dkv * (num_qk + num_v)
                         + N * L * (num_qk + num_v)))
    transcendentals = int(B * num_heads * N * L + B * (N + L))
    bytes_accessed = int(
        x_q.size * x_q.dtype.itemsize
        + x_kv.size * x_kv.dtype.itemsize
        + B * N * num_v * x_q.dtype.itemsize
        + prep["wq_s"].size * 2 + prep["wkv"].size * 2
        + 4 * (2 * num_qk + num_v + 2 * Dq + 2 * Dkv))

    return pl.pallas_call(
        kern,
        out_shape=jax.ShapeDtypeStruct((B, N, num_v), x_q.dtype),
        grid=(B // TB,),
        in_specs=[
            pl.BlockSpec((TB, N, Dq), lambda b: (b, 0, 0)),
            pl.BlockSpec((TB, L, Dkv), lambda b: (b, 0, 0)),
            # Constant-index operands: the pipeline fetches these only once.
            pl.BlockSpec((1, Dq), lambda b: (0, 0)),
            pl.BlockSpec((1, Dq), lambda b: (0, 0)),
            pl.BlockSpec((1, Dkv), lambda b: (0, 0)),
            pl.BlockSpec((1, Dkv), lambda b: (0, 0)),
            pl.BlockSpec((Dq, num_qk), lambda b: (0, 0)),
            pl.BlockSpec((1, num_qk), lambda b: (0, 0)),
            pl.BlockSpec((Dkv, num_qk + num_v), lambda b: (0, 0)),
            pl.BlockSpec((1, num_qk + num_v), lambda b: (0, 0)),
        ],
        out_specs=pl.BlockSpec((TB, N, num_v), lambda b: (b, 0, 0)),
        compiler_params=pltpu.CompilerParams(
            dimension_semantics=("parallel",)),
        cost_estimate=pl.CostEstimate(flops=flops,
                                      transcendentals=transcendentals,
                                      bytes_accessed=bytes_accessed),
    )(x_q, x_kv,
      prep["q_norm_g2"], prep["q_norm_b2"],
      prep["kv_norm_g2"], prep["kv_norm_b2"],
      prep["wq_s"], prep["bq_s"], prep["wkv"], prep["bkv"])


# ----------------------------------------------------------------------------
# Small plain-JAX LayerNorm (used only for the rarely-exercised Perceiver-AR
# prefix path and for the reference check).
# ----------------------------------------------------------------------------
def _layernorm_jax(x, g, b, eps=1e-5):
    mean = jnp.mean(x, axis=-1, keepdims=True)
    xc = x - mean
    var = jnp.mean(xc * xc, axis=-1, keepdims=True)
    return xc * jax.lax.rsqrt(var + eps) * g + b


def cross_attention_forward(prep, x_q, x_kv=None, x_kv_prefix=None):
    if x_kv is None:
        # Perceiver-AR path: kv = [LN_kv(prefix), LN_q(x_q)] (two different
        # norms per segment) -> pre-normalize here, kernel skips its kv LN.
        xq_n = _layernorm_jax(x_q, prep["q_norm_g"], prep["q_norm_b"])
        pref_n = _layernorm_jax(x_kv_prefix, prep["kv_norm_g"], prep["kv_norm_b"])
        xkv = jnp.concatenate([pref_n, xq_n], axis=1)
        return fused_cross_attention(x_q, xkv, prep, normalize_kv=False)
    return fused_cross_attention(x_q, x_kv, prep, normalize_kv=True)


# ----------------------------------------------------------------------------
# Parameters (synthetic, deterministic) + one-time prep transform.
# ----------------------------------------------------------------------------
def make_params(key, num_heads, num_q_input_channels, num_kv_input_channels,
                num_qk_channels=None, num_v_channels=None):
    if num_qk_channels is None:
        num_qk_channels = num_q_input_channels
    if num_v_channels is None:
        num_v_channels = num_qk_channels
    ks = jax.random.split(key, 6)
    return {
        "num_heads": num_heads,
        # LayerNorm params (torch default init: ones / zeros)
        "q_norm_g": jnp.ones((num_q_input_channels,), jnp.float32),
        "q_norm_b": jnp.zeros((num_q_input_channels,), jnp.float32),
        "kv_norm_g": jnp.ones((num_kv_input_channels,), jnp.float32),
        "kv_norm_b": jnp.zeros((num_kv_input_channels,), jnp.float32),
        # Projection weights (in, out) and biases
        "wq": 0.05 * jax.random.normal(ks[0], (num_q_input_channels, num_qk_channels), jnp.float32),
        "bq": 0.05 * jax.random.normal(ks[1], (num_qk_channels,), jnp.float32),
        "wk": 0.05 * jax.random.normal(ks[2], (num_kv_input_channels, num_qk_channels), jnp.float32),
        "bk": 0.05 * jax.random.normal(ks[3], (num_qk_channels,), jnp.float32),
        "wv": 0.05 * jax.random.normal(ks[4], (num_kv_input_channels, num_v_channels), jnp.float32),
        "bv": 0.05 * jax.random.normal(ks[5], (num_v_channels,), jnp.float32),
    }


def prepare_params(p):
    """One-time parameter transform (outside the hot path):
       * fold dp_scale into Wq / bq,
       * fuse Wk|Wv and bk|bv into a single projection,
       * cast matmul weights to bfloat16 (MXU-native), biases stay f32,
       * reshape LN/bias vectors to (1, C) 2-D TPU-friendly layouts."""
    num_heads = p["num_heads"]
    num_qk = p["wq"].shape[1]
    num_v = p["wv"].shape[1]
    dp_scale = float(num_qk // num_heads) ** (-0.5)
    prep = dict(p)
    prep.update({
        "num_qk": num_qk,
        "num_v": num_v,
        "q_norm_g2": p["q_norm_g"].reshape(1, -1),
        "q_norm_b2": p["q_norm_b"].reshape(1, -1),
        "kv_norm_g2": p["kv_norm_g"].reshape(1, -1),
        "kv_norm_b2": p["kv_norm_b"].reshape(1, -1),
        "wq_s": (p["wq"] * dp_scale).astype(jnp.bfloat16),
        "bq_s": (p["bq"] * dp_scale).reshape(1, -1),
        "wkv": jnp.concatenate([p["wk"], p["wv"]], axis=1).astype(jnp.bfloat16),
        "bkv": jnp.concatenate([p["bk"], p["bv"]]).reshape(1, -1),
    })
    return prep


# ----------------------------------------------------------------------------
# Pure-JAX f32 reference (for in-script correctness check).
# ----------------------------------------------------------------------------
def cross_attention_reference(p, x_q, x_kv):
    num_heads = p["num_heads"]
    xq_n = _layernorm_jax(x_q, p["q_norm_g"], p["q_norm_b"])
    xkv_n = _layernorm_jax(x_kv, p["kv_norm_g"], p["kv_norm_b"])
    q = xq_n @ p["wq"] + p["bq"]
    k = xkv_n @ p["wk"] + p["bk"]
    v = xkv_n @ p["wv"] + p["bv"]
    B, N, num_qk = q.shape
    L = k.shape[1]
    num_v = v.shape[2]
    cqk = num_qk // num_heads
    cv = num_v // num_heads
    qh = q.reshape(B, N, num_heads, cqk).transpose(0, 2, 1, 3) * (float(cqk) ** -0.5)
    kh = k.reshape(B, L, num_heads, cqk).transpose(0, 2, 1, 3)
    vh = v.reshape(B, L, num_heads, cv).transpose(0, 2, 1, 3)
    s = jnp.einsum("bhnc,bhlc->bhnl", qh, kh)
    attn = jax.nn.softmax(s, axis=-1)
    oh = jnp.einsum("bhnl,bhlc->bhnc", attn, vh)
    return oh.transpose(0, 2, 1, 3).reshape(B, N, num_heads * cv)


if __name__ == "__main__":
    key = jax.random.PRNGKey(0)
    kp, kq, kkv = jax.random.split(key, 3)

    # Small shapes consistent with the module's forward:
    #   x_q : (B, N, Dq), x_kv : (B, L, Dkv)
    B, N, L = 2, 8, 16
    num_heads = 4
    Dq, Dkv = 32, 32

    raw = make_params(kp, num_heads, Dq, Dkv)
    prep = prepare_params(raw)

    x_q = jax.random.normal(kq, (B, N, Dq), jnp.float32)
    x_kv = jax.random.normal(kkv, (B, L, Dkv), jnp.float32)

    out = cross_attention_forward(prep, x_q, x_kv=x_kv)
    out = jax.block_until_ready(out)

    assert out.shape == (B, N, Dq), out.shape
    assert jnp.all(jnp.isfinite(out))

    # Cross-check against a pure-JAX f32 reference (kernel feeds the MXU bf16,
    # so tolerance is bf16-level).
    ref = cross_attention_reference(raw, x_q, x_kv)
    max_err = float(jnp.max(jnp.abs(out - ref)))
    assert jnp.allclose(out, ref, atol=3e-2, rtol=3e-2), max_err

    print("KERNEL_OK")
</pallas_src>

<mosaic_0001>
module attributes {stable_mosaic.version = 11 : i64} {
  func.func @_cross_attention_kernel(%arg0: i32, %arg1: memref<2x8x32xf32, #tpu.memory_space<vmem>>, %arg2: memref<2x16x32xf32, #tpu.memory_space<vmem>>, %arg3: memref<1x32xf32, #tpu.memory_space<vmem>>, %arg4: memref<1x32xf32, #tpu.memory_space<vmem>>, %arg5: memref<1x32xf32, #tpu.memory_space<vmem>>, %arg6: memref<1x32xf32, #tpu.memory_space<vmem>>, %arg7: memref<32x32xbf16, #tpu.memory_space<vmem>>, %arg8: memref<1x32xf32, #tpu.memory_space<vmem>>, %arg9: memref<32x64xbf16, #tpu.memory_space<vmem>>, %arg10: memref<1x64xf32, #tpu.memory_space<vmem>>, %arg11: memref<2x8x32xf32, #tpu.memory_space<vmem>>) attributes {dimension_semantics = [#tpu.dimension_semantics<parallel>], iteration_bounds = array<i64: 1>, scalar_prefetch = 0 : i64, scratch_operands = 0 : i64, tpu.core_type = #tpu.core_type<tc>, window_params = [{transform_indices = @transform_0, window_bounds = array<i64: 2, 8, 32>}, {transform_indices = @transform_1, window_bounds = array<i64: 2, 16, 32>}, {pipeline_mode = #tpu.pipeline_mode<synchronous>, transform_indices = @transform_2, window_bounds = array<i64: 1, 32>}, {pipeline_mode = #tpu.pipeline_mode<synchronous>, transform_indices = @transform_3, window_bounds = array<i64: 1, 32>}, {pipeline_mode = #tpu.pipeline_mode<synchronous>, transform_indices = @transform_4, window_bounds = array<i64: 1, 32>}, {pipeline_mode = #tpu.pipeline_mode<synchronous>, transform_indices = @transform_5, window_bounds = array<i64: 1, 32>}, {pipeline_mode = #tpu.pipeline_mode<synchronous>, transform_indices = @transform_6, window_bounds = array<i64: 32, 32>}, {pipeline_mode = #tpu.pipeline_mode<synchronous>, transform_indices = @transform_7, window_bounds = array<i64: 1, 32>}, {pipeline_mode = #tpu.pipeline_mode<synchronous>, transform_indices = @transform_8, window_bounds = array<i64: 32, 64>}, {pipeline_mode = #tpu.pipeline_mode<synchronous>, transform_indices = @transform_9, window_bounds = array<i64: 1, 64>}, {transform_indices = @transform_10, window_bounds = array<i64: 2, 8, 32>}]} {
    %c0 = arith.constant 0 : index
    %c0_0 = arith.constant 0 : index
    %c0_1 = arith.constant 0 : index
    %0 = vector.load %arg1[%c0, %c0_0, %c0_1] : memref<2x8x32xf32, #tpu.memory_space<vmem>>, vector<2x8x32xf32>
    %1 = vector.shape_cast %0 : vector<2x8x32xf32> to vector<16x32xf32>
    %c0_2 = arith.constant 0 : index
    %c0_3 = arith.constant 0 : index
    %2 = vector.load %arg3[%c0_2, %c0_3] : memref<1x32xf32, #tpu.memory_space<vmem>>, vector<1x32xf32>
    %c0_4 = arith.constant 0 : index
    %c0_5 = arith.constant 0 : index
    %3 = vector.load %arg4[%c0_4, %c0_5] : memref<1x32xf32, #tpu.memory_space<vmem>>, vector<1x32xf32>
    %cst = arith.constant dense<0.000000e+00> : vector<16xf32>
    %4 = vector.multi_reduction <add>, %1, %cst [1] : vector<16x32xf32> to vector<16xf32>
    %5 = vector.shape_cast %4 : vector<16xf32> to vector<16x1xf32>
    %cst_6 = arith.constant 3.200000e+01 : f32
    %6 = vector.broadcast %cst_6 : f32 to vector<16x1xf32>
    %7 = arith.divf %5, %6 : vector<16x1xf32>
    %8 = vector.broadcast %7 : vector<16x1xf32> to vector<16x32xf32>
    %9 = arith.subf %1, %8 : vector<16x32xf32>
    %10 = arith.mulf %9, %9 : vector<16x32xf32>
    %cst_7 = arith.constant dense<0.000000e+00> : vector<16xf32>
    %11 = vector.multi_reduction <add>, %10, %cst_7 [1] : vector<16x32xf32> to vector<16xf32>
    %12 = vector.shape_cast %11 : vector<16xf32> to vector<16x1xf32>
    %cst_8 = arith.constant 3.200000e+01 : f32
    %13 = vector.broadcast %cst_8 : f32 to vector<16x1xf32>
    %14 = arith.divf %12, %13 : vector<16x1xf32>
    %cst_9 = arith.constant 9.99999974E-6 : f32
    %15 = vector.broadcast %cst_9 : f32 to vector<16x1xf32>
    %16 = arith.addf %14, %15 : vector<16x1xf32>
    %17 = math.rsqrt %16 : vector<16x1xf32>
    %18 = vector.broadcast %17 : vector<16x1xf32> to vector<16x32xf32>
    %19 = arith.mulf %9, %18 : vector<16x32xf32>
    %20 = vector.broadcast %2 : vector<1x32xf32> to vector<16x32xf32>
    %21 = arith.mulf %19, %20 : vector<16x32xf32>
    %22 = vector.broadcast %3 : vector<1x32xf32> to vector<16x32xf32>
    %23 = arith.addf %21, %22 : vector<16x32xf32>
    %c0_10 = arith.constant 0 : index
    %c0_11 = arith.constant 0 : index
    %c0_12 = arith.constant 0 : index
    %24 = vector.load %arg2[%c0_10, %c0_11, %c0_12] : memref<2x16x32xf32, #tpu.memory_space<vmem>>, vector<2x16x32xf32>
    %25 = vector.shape_cast %24 : vector<2x16x32xf32> to vector<32x32xf32>
    %c0_13 = arith.constant 0 : index
    %c0_14 = arith.constant 0 : index
    %26 = vector.load %arg5[%c0_13, %c0_14] : memref<1x32xf32, #tpu.memory_space<vmem>>, vector<1x32xf32>
    %c0_15 = arith.constant 0 : index
    %c0_16 = arith.constant 0 : index
    %27 = vector.load %arg6[%c0_15, %c0_16] : memref<1x32xf32, #tpu.memory_space<vmem>>, vector<1x32xf32>
    %cst_17 = arith.constant dense<0.000000e+00> : vector<32xf32>
    %28 = vector.multi_reduction <add>, %25, %cst_17 [1] : vector<32x32xf32> to vector<32xf32>
    %29 = vector.shape_cast %28 : vector<32xf32> to vector<32x1xf32>
    %cst_18 = arith.constant 3.200000e+01 : f32
    %30 = vector.broadcast %cst_18 : f32 to vector<32x1xf32>
    %31 = arith.divf %29, %30 : vector<32x1xf32>
    %32 = vector.broadcast %31 : vector<32x1xf32> to vector<32x32xf32>
    %33 = arith.subf %25, %32 : vector<32x32xf32>
    %34 = arith.mulf %33, %33 : vector<32x32xf32>
    %cst_19 = arith.constant dense<0.000000e+00> : vector<32xf32>
    %35 = vector.multi_reduction <add>, %34, %cst_19 [1] : vector<32x32xf32> to vector<32xf32>
    %36 = vector.shape_cast %35 : vector<32xf32> to vector<32x1xf32>
    %cst_20 = arith.constant 3.200000e+01 : f32
    %37 = vector.broadcast %cst_20 : f32 to vector<32x1xf32>
    %38 = arith.divf %36, %37 : vector<32x1xf32>
    %cst_21 = arith.constant 9.99999974E-6 : f32
    %39 = vector.broadcast %cst_21 : f32 to vector<32x1xf32>
    %40 = arith.addf %38, %39 : vector<32x1xf32>
    %41 = math.rsqrt %40 : vector<32x1xf32>
    %42 = vector.broadcast %41 : vector<32x1xf32> to vector<32x32xf32>
    %43 = arith.mulf %33, %42 : vector<32x32xf32>
    %44 = vector.broadcast %26 : vector<1x32xf32> to vector<32x32xf32>
    %45 = arith.mulf %43, %44 : vector<32x32xf32>
    %46 = vector.broadcast %27 : vector<1x32xf32> to vector<32x32xf32>
    %47 = arith.addf %45, %46 : vector<32x32xf32>
    %48 = arith.truncf %23 : vector<16x32xf32> to vector<16x32xbf16>
    %c0_22 = arith.constant 0 : index
    %c0_23 = arith.constant 0 : index
    %49 = vector.load %arg7[%c0_22, %c0_23] : memref<32x32xbf16, #tpu.memory_space<vmem>>, vector<32x32xbf16>
    %cst_24 = arith.constant dense<0.000000e+00> : vector<16x32xf32>
    %50 = tpu.matmul %48, %49, %cst_24 {dimension_numbers = #tpu.dot_dimension_numbers<[1], [0], [0], [1], [0, 0, 1, 1], [], []>} : vector<16x32xbf16>, vector<32x32xbf16>, vector<16x32xf32> -> vector<16x32xf32>
    %c0_25 = arith.constant 0 : index
    %c0_26 = arith.constant 0 : index
    %51 = vector.load %arg8[%c0_25, %c0_26] : memref<1x32xf32, #tpu.memory_space<vmem>>, vector<1x32xf32>
    %52 = vector.broadcast %51 : vector<1x32xf32> to vector<16x32xf32>
    %53 = arith.addf %50, %52 : vector<16x32xf32>
    %54 = arith.truncf %47 : vector<32x32xf32> to vector<32x32xbf16>
    %c0_27 = arith.constant 0 : index
    %c0_28 = arith.constant 0 : index
    %55 = vector.load %arg9[%c0_27, %c0_28] : memref<32x64xbf16, #tpu.memory_space<vmem>>, vector<32x64xbf16>
    %cst_29 = arith.constant dense<0.000000e+00> : vector<32x64xf32>
    %56 = tpu.matmul %54, %55, %cst_29 {dimension_numbers = #tpu.dot_dimension_numbers<[1], [0], [0], [1], [0, 0, 1, 1], [], []>} : vector<32x32xbf16>, vector<32x64xbf16>, vector<32x64xf32> -> vector<32x64xf32>
    %c0_30 = arith.constant 0 : index
    %c0_31 = arith.constant 0 : index
    %57 = vector.load %arg10[%c0_30, %c0_31] : memref<1x64xf32, #tpu.memory_space<vmem>>, vector<1x64xf32>
    %58 = vector.broadcast %57 : vector<1x64xf32> to vector<32x64xf32>
    %59 = arith.addf %56, %58 : vector<32x64xf32>
    %60 = arith.truncf %53 : vector<16x32xf32> to vector<16x32xbf16>
    %61 = vector.shape_cast %60 : vector<16x32xbf16> to vector<2x8x32xbf16>
    %62 = arith.truncf %59 : vector<32x64xf32> to vector<32x64xbf16>
    %63 = vector.shape_cast %62 : vector<32x64xbf16> to vector<2x16x64xbf16>
    %64 = vector.extract_strided_slice %63 {offsets = [0, 0, 0], sizes = [2, 16, 32], strides = [1, 1, 1]} : vector<2x16x64xbf16> to vector<2x16x32xbf16>
    %65 = vector.extract_strided_slice %63 {offsets = [0, 0, 32], sizes = [2, 16, 32], strides = [1, 1, 1]} : vector<2x16x64xbf16> to vector<2x16x32xbf16>
    %66 = vector.extract_strided_slice %61 {offsets = [0, 0, 0], sizes = [2, 8, 8], strides = [1, 1, 1]} : vector<2x8x32xbf16> to vector<2x8x8xbf16>
    %67 = vector.extract_strided_slice %64 {offsets = [0, 0, 0], sizes = [2, 16, 8], strides = [1, 1, 1]} : vector<2x16x32xbf16> to vector<2x16x8xbf16>
    %68 = vector.extract_strided_slice %65 {offsets = [0, 0, 0], sizes = [2, 16, 8], strides = [1, 1, 1]} : vector<2x16x32xbf16> to vector<2x16x8xbf16>
    "tpu.trace_start"() <{level = 10 : i32, message = "bnc,blc->bnl"}> : () -> ()
    %cst_32 = arith.constant dense<0.000000e+00> : vector<2x8x16xf32>
    %69 = tpu.matmul %66, %67, %cst_32 {dimension_numbers = #tpu.dot_dimension_numbers<[2], [2], [1], [1], [0, 0, 0, 1, 1, 1], [0], [0]>} : vector<2x8x8xbf16>, vector<2x16x8xbf16>, vector<2x8x16xf32> -> vector<2x8x16xf32>
    "tpu.trace_stop"() : () -> ()
    %cst_33 = arith.constant dense<0xFF800000> : vector<2x8xf32>
    %70 = vector.multi_reduction <maximumf>, %69, %cst_33 [2] : vector<2x8x16xf32> to vector<2x8xf32>
    %71 = vector.shape_cast %70 : vector<2x8xf32> to vector<2x8x1xf32>
    %72 = vector.broadcast %71 : vector<2x8x1xf32> to vector<2x8x16xf32>
    %73 = arith.subf %69, %72 : vector<2x8x16xf32>
    %74 = math.exp %73 : vector<2x8x16xf32>
    %cst_34 = arith.constant dense<0.000000e+00> : vector<2x8xf32>
    %75 = vector.multi_reduction <add>, %74, %cst_34 [2] : vector<2x8x16xf32> to vector<2x8xf32>
    %76 = vector.shape_cast %75 : vector<2x8xf32> to vector<2x8x1xf32>
    %77 = tpu.reciprocal %76 {approx = true} : vector<2x8x1xf32> -> vector<2x8x1xf32>
    %78 = vector.broadcast %77 : vector<2x8x1xf32> to vector<2x8x16xf32>
    %79 = arith.mulf %74, %78 : vector<2x8x16xf32>
    %80 = arith.truncf %79 : vector<2x8x16xf32> to vector<2x8x16xbf16>
    "tpu.trace_start"() <{level = 10 : i32, message = "bnl,blc->bnc"}> : () -> ()
    %cst_35 = arith.constant dense<0.000000e+00> : vector<2x8x8xf32>
    %81 = tpu.matmul %80, %68, %cst_35 {dimension_numbers = #tpu.dot_dimension_numbers<[2], [1], [1], [2], [0, 0, 0, 1, 1, 2], [0], [0]>} : vector<2x8x16xbf16>, vector<2x16x8xbf16>, vector<2x8x8xf32> -> vector<2x8x8xf32>
    "tpu.trace_stop"() : () -> ()
    %c0_36 = arith.constant 0 : index
    %c0_37 = arith.constant 0 : index
    %c0_38 = arith.constant 0 : index
    %82 = vector.load %arg11[%c0_36, %c0_37, %c0_38] : memref<2x8x32xf32, #tpu.memory_space<vmem>>, vector<2x8x8xf32>
    tpu.vector_store %arg11[%c0_36, %c0_37, %c0_38], %81 {strides = array<i32>} : memref<2x8x32xf32, #tpu.memory_space<vmem>>, vector<2x8x8xf32>,
    %83 = vector.extract_strided_slice %61 {offsets = [0, 0, 8], sizes = [2, 8, 8], strides = [1, 1, 1]} : vector<2x8x32xbf16> to vector<2x8x8xbf16>
    %84 = vector.extract_strided_slice %64 {offsets = [0, 0, 8], sizes = [2, 16, 8], strides = [1, 1, 1]} : vector<2x16x32xbf16> to vector<2x16x8xbf16>
    %85 = vector.extract_strided_slice %65 {offsets = [0, 0, 8], sizes = [2, 16, 8], strides = [1, 1, 1]} : vector<2x16x32xbf16> to vector<2x16x8xbf16>
    "tpu.trace_start"() <{level = 10 : i32, message = "bnc,blc->bnl"}> : () -> ()
    %cst_39 = arith.constant dense<0.000000e+00> : vector<2x8x16xf32>
    %86 = tpu.matmul %83, %84, %cst_39 {dimension_numbers = #tpu.dot_dimension_numbers<[2], [2], [1], [1], [0, 0, 0, 1, 1, 1], [0], [0]>} : vector<2x8x8xbf16>, vector<2x16x8xbf16>, vector<2x8x16xf32> -> vector<2x8x16xf32>
    "tpu.trace_stop"() : () -> ()
    %cst_40 = arith.constant dense<0xFF800000> : vector<2x8xf32>
    %87 = vector.multi_reduction <maximumf>, %86, %cst_40 [2] : vector<2x8x16xf32> to vector<2x8xf32>
    %88 = vector.shape_cast %87 : vector<2x8xf32> to vector<2x8x1xf32>
    %89 = vector.broadcast %88 : vector<2x8x1xf32> to vector<2x8x16xf32>
    %90 = arith.subf %86, %89 : vector<2x8x16xf32>
    %91 = math.exp %90 : vector<2x8x16xf32>
    %cst_41 = arith.constant dense<0.000000e+00> : vector<2x8xf32>
    %92 = vector.multi_reduction <add>, %91, %cst_41 [2] : vector<2x8x16xf32> to vector<2x8xf32>
    %93 = vector.shape_cast %92 : vector<2x8xf32> to vector<2x8x1xf32>
    %94 = tpu.reciprocal %93 {approx = true} : vector<2x8x1xf32> -> vector<2x8x1xf32>
    %95 = vector.broadcast %94 : vector<2x8x1xf32> to vector<2x8x16xf32>
    %96 = arith.mulf %91, %95 : vector<2x8x16xf32>
    %97 = arith.truncf %96 : vector<2x8x16xf32> to vector<2x8x16xbf16>
    "tpu.trace_start"() <{level = 10 : i32, message = "bnl,blc->bnc"}> : () -> ()
    %cst_42 = arith.constant dense<0.000000e+00> : vector<2x8x8xf32>
    %98 = tpu.matmul %97, %85, %cst_42 {dimension_numbers = #tpu.dot_dimension_numbers<[2], [1], [1], [2], [0, 0, 0, 1, 1, 2], [0], [0]>} : vector<2x8x16xbf16>, vector<2x16x8xbf16>, vector<2x8x8xf32> -> vector<2x8x8xf32>
    "tpu.trace_stop"() : () -> ()
    %c0_43 = arith.constant 0 : index
    %c0_44 = arith.constant 0 : index
    %c8 = arith.constant 8 : index
    %99 = vector.load %arg11[%c0_43, %c0_44, %c8] : memref<2x8x32xf32, #tpu.memory_space<vmem>>, vector<2x8x8xf32>
    tpu.vector_store %arg11[%c0_43, %c0_44, %c8], %98 {strides = array<i32>} : memref<2x8x32xf32, #tpu.memory_space<vmem>>, vector<2x8x8xf32>,
    %100 = vector.extract_strided_slice %61 {offsets = [0, 0, 16], sizes = [2, 8, 8], strides = [1, 1, 1]} : vector<2x8x32xbf16> to vector<2x8x8xbf16>
    %101 = vector.extract_strided_slice %64 {offsets = [0, 0, 16], sizes = [2, 16, 8], strides = [1, 1, 1]} : vector<2x16x32xbf16> to vector<2x16x8xbf16>
    %102 = vector.extract_strided_slice %65 {offsets = [0, 0, 16], sizes = [2, 16, 8], strides = [1, 1, 1]} : vector<2x16x32xbf16> to vector<2x16x8xbf16>
    "tpu.trace_start"() <{level = 10 : i32, message = "bnc,blc->bnl"}> : () -> ()
    %cst_45 = arith.constant dense<0.000000e+00> : vector<2x8x16xf32>
    %103 = tpu.matmul %100, %101, %cst_45 {dimension_numbers = #tpu.dot_dimension_numbers<[2], [2], [1], [1], [0, 0, 0, 1, 1, 1], [0], [0]>} : vector<2x8x8xbf16>, vector<2x16x8xbf16>, vector<2x8x16xf32> -> vector<2x8x16xf32>
    "tpu.trace_stop"() : () -> ()
    %cst_46 = arith.constant dense<0xFF800000> : vector<2x8xf32>
    %104 = vector.multi_reduction <maximumf>, %103, %cst_46 [2] : vector<2x8x16xf32> to vector<2x8xf32>
    %105 = vector.shape_cast %104 : vector<2x8xf32> to vector<2x8x1xf32>
    %106 = vector.broadcast %105 : vector<2x8x1xf32> to vector<2x8x16xf32>
    %107 = arith.subf %103, %106 : vector<2x8x16xf32>
    %108 = math.exp %107 : vector<2x8x16xf32>
    %cst_47 = arith.constant dense<0.000000e+00> : vector<2x8xf32>
    %109 = vector.multi_reduction <add>, %108, %cst_47 [2] : vector<2x8x16xf32> to vector<2x8xf32>
    %110 = vector.shape_cast %109 : vector<2x8xf32> to vector<2x8x1xf32>
    %111 = tpu.reciprocal %110 {approx = true} : vector<2x8x1xf32> -> vector<2x8x1xf32>
    %112 = vector.broadcast %111 : vector<2x8x1xf32> to vector<2x8x16xf32>
    %113 = arith.mulf %108, %112 : vector<2x8x16xf32>
    %114 = arith.truncf %113 : vector<2x8x16xf32> to vector<2x8x16xbf16>
    "tpu.trace_start"() <{level = 10 : i32, message = "bnl,blc->bnc"}> : () -> ()
    %cst_48 = arith.constant dense<0.000000e+00> : vector<2x8x8xf32>
    %115 = tpu.matmul %114, %102, %cst_48 {dimension_numbers = #tpu.dot_dimension_numbers<[2], [1], [1], [2], [0, 0, 0, 1, 1, 2], [0], [0]>} : vector<2x8x16xbf16>, vector<2x16x8xbf16>, vector<2x8x8xf32> -> vector<2x8x8xf32>
    "tpu.trace_stop"() : () -> ()
    %c0_49 = arith.constant 0 : index
    %c0_50 = arith.constant 0 : index
    %c16 = arith.constant 16 : index
    %116 = vector.load %arg11[%c0_49, %c0_50, %c16] : memref<2x8x32xf32, #tpu.memory_space<vmem>>, vector<2x8x8xf32>
    tpu.vector_store %arg11[%c0_49, %c0_50, %c16], %115 {strides = array<i32>} : memref<2x8x32xf32, #tpu.memory_space<vmem>>, vector<2x8x8xf32>,
    %117 = vector.extract_strided_slice %61 {offsets = [0, 0, 24], sizes = [2, 8, 8], strides = [1, 1, 1]} : vector<2x8x32xbf16> to vector<2x8x8xbf16>
    %118 = vector.extract_strided_slice %64 {offsets = [0, 0, 24], sizes = [2, 16, 8], strides = [1, 1, 1]} : vector<2x16x32xbf16> to vector<2x16x8xbf16>
    %119 = vector.extract_strided_slice %65 {offsets = [0, 0, 24], sizes = [2, 16, 8], strides = [1, 1, 1]} : vector<2x16x32xbf16> to vector<2x16x8xbf16>
    "tpu.trace_start"() <{level = 10 : i32, message = "bnc,blc->bnl"}> : () -> ()
    %cst_51 = arith.constant dense<0.000000e+00> : vector<2x8x16xf32>
    %120 = tpu.matmul %117, %118, %cst_51 {dimension_numbers = #tpu.dot_dimension_numbers<[2], [2], [1], [1], [0, 0, 0, 1, 1, 1], [0], [0]>} : vector<2x8x8xbf16>, vector<2x16x8xbf16>, vector<2x8x16xf32> -> vector<2x8x16xf32>
    "tpu.trace_stop"() : () -> ()
    %cst_52 = arith.constant dense<0xFF800000> : vector<2x8xf32>
    %121 = vector.multi_reduction <maximumf>, %120, %cst_52 [2] : vector<2x8x16xf32> to vector<2x8xf32>
    %122 = vector.shape_cast %121 : vector<2x8xf32> to vector<2x8x1xf32>
    %123 = vector.broadcast %122 : vector<2x8x1xf32> to vector<2x8x16xf32>
    %124 = arith.subf %120, %123 : vector<2x8x16xf32>
    %125 = math.exp %124 : vector<2x8x16xf32>
    %cst_53 = arith.constant dense<0.000000e+00> : vector<2x8xf32>
    %126 = vector.multi_reduction <add>, %125, %cst_53 [2] : vector<2x8x16xf32> to vector<2x8xf32>
    %127 = vector.shape_cast %126 : vector<2x8xf32> to vector<2x8x1xf32>
    %128 = tpu.reciprocal %127 {approx = true} : vector<2x8x1xf32> -> vector<2x8x1xf32>
    %129 = vector.broadcast %128 : vector<2x8x1xf32> to vector<2x8x16xf32>
    %130 = arith.mulf %125, %129 : vector<2x8x16xf32>
    %131 = arith.truncf %130 : vector<2x8x16xf32> to vector<2x8x16xbf16>
    "tpu.trace_start"() <{level = 10 : i32, message = "bnl,blc->bnc"}> : () -> ()
    %cst_54 = arith.constant dense<0.000000e+00> : vector<2x8x8xf32>
    %132 = tpu.matmul %131, %119, %cst_54 {dimension_numbers = #tpu.dot_dimension_numbers<[2], [1], [1], [2], [0, 0, 0, 1, 1, 2], [0], [0]>} : vector<2x8x16xbf16>, vector<2x16x8xbf16>, vector<2x8x8xf32> -> vector<2x8x8xf32>
    "tpu.trace_stop"() : () -> ()
    %c0_55 = arith.constant 0 : index
    %c0_56 = arith.constant 0 : index
    %c24 = arith.constant 24 : index
    %133 = vector.load %arg11[%c0_55, %c0_56, %c24] : memref<2x8x32xf32, #tpu.memory_space<vmem>>, vector<2x8x8xf32>
    tpu.vector_store %arg11[%c0_55, %c0_56, %c24], %132 {strides = array<i32>} : memref<2x8x32xf32, #tpu.memory_space<vmem>>, vector<2x8x8xf32>,
    return
  }
  func.func @transform_0(%arg0: i32) -> (i32, i32, i32) {
    %c0_i32 = arith.constant 0 : i32
    %c0_i32_0 = arith.constant 0 : i32
    %c0_i32_1 = arith.constant 0 : i32
    return %arg0, %c0_i32, %c0_i32_0 : i32, i32, i32
  }
  func.func @transform_1(%arg0: i32) -> (i32, i32, i32) {
    %c0_i32 = arith.constant 0 : i32
    %c0_i32_0 = arith.constant 0 : i32
    %c0_i32_1 = arith.constant 0 : i32
    return %arg0, %c0_i32, %c0_i32_0 : i32, i32, i32
  }
  func.func @transform_2(%arg0: i32) -> (i32, i32) {
    %c0_i32 = arith.constant 0 : i32
    %c0_i32_0 = arith.constant 0 : i32
    %c0_i32_1 = arith.constant 0 : i32
    return %c0_i32, %c0_i32_0 : i32, i32
  }
  func.func @transform_3(%arg0: i32) -> (i32, i32) {
    %c0_i32 = arith.constant 0 : i32
    %c0_i32_0 = arith.constant 0 : i32
    %c0_i32_1 = arith.constant 0 : i32
    return %c0_i32, %c0_i32_0 : i32, i32
  }
  func.func @transform_4(%arg0: i32) -> (i32, i32) {
    %c0_i32 = arith.constant 0 : i32
    %c0_i32_0 = arith.constant 0 : i32
    %c0_i32_1 = arith.constant 0 : i32
    return %c0_i32, %c0_i32_0 : i32, i32
  }
  func.func @transform_5(%arg0: i32) -> (i32, i32) {
    %c0_i32 = arith.constant 0 : i32
    %c0_i32_0 = arith.constant 0 : i32
    %c0_i32_1 = arith.constant 0 : i32
    return %c0_i32, %c0_i32_0 : i32, i32
  }
  func.func @transform_6(%arg0: i32) -> (i32, i32) {
    %c0_i32 = arith.constant 0 : i32
    %c0_i32_0 = arith.constant 0 : i32
    %c0_i32_1 = arith.constant 0 : i32
    return %c0_i32, %c0_i32_0 : i32, i32
  }
  func.func @transform_7(%arg0: i32) -> (i32, i32) {
    %c0_i32 = arith.constant 0 : i32
    %c0_i32_0 = arith.constant 0 : i32
    %c0_i32_1 = arith.constant 0 : i32
    return %c0_i32, %c0_i32_0 : i32, i32
  }
  func.func @transform_8(%arg0: i32) -> (i32, i32) {
    %c0_i32 = arith.constant 0 : i32
    %c0_i32_0 = arith.constant 0 : i32
    %c0_i32_1 = arith.constant 0 : i32
    return %c0_i32, %c0_i32_0 : i32, i32
  }
  func.func @transform_9(%arg0: i32) -> (i32, i32) {
    %c0_i32 = arith.constant 0 : i32
    %c0_i32_0 = arith.constant 0 : i32
    %c0_i32_1 = arith.constant 0 : i32
    return %c0_i32, %c0_i32_0 : i32, i32
  }
  func.func @transform_10(%arg0: i32) -> (i32, i32, i32) {
    %c0_i32 = arith.constant 0 : i32
    %c0_i32_0 = arith.constant 0 : i32
    %c0_i32_1 = arith.constant 0 : i32
    return %arg0, %c0_i32, %c0_i32_0 : i32, i32, i32
  }
}

</mosaic_0001>

<llo_original>
// kernel: tpu_custom_call.1
$region0: #{tpu_custom_call.1}
  #allocation0 [shape = 'u32[]', space=smem, size = 0x4, offset = 0x4, fixed_abs, tag = 'smem constant byte address 0x4 - core index']
  #allocation1 [shape = 'u32[72,128]{1,0:T(1,128)}', space=vmem, size = 0x9000, scoped, tag = 'internal scratch']
  %s0 = inlined_call_operand.hbm [shape: f32[2,8,32], index: 0, kind: input, shape index: {}]
  %s1 = inlined_call_operand.hbm [shape: f32[2,16,32], index: 1, kind: input, shape index: {}]
  %s2 = inlined_call_operand.vmem [shape: f32[1,32], index: 2, kind: input, shape index: {}]
  %s3 = inlined_call_operand.vmem [shape: f32[1,32], index: 3, kind: input, shape index: {}]
  %s4 = inlined_call_operand.vmem [shape: f32[1,32], index: 4, kind: input, shape index: {}]
  %s5 = inlined_call_operand.vmem [shape: f32[1,32], index: 5, kind: input, shape index: {}]
  %s6 = inlined_call_operand.hbm [shape: bf16[32,32], index: 6, kind: input, shape index: {}]
  %s7 = inlined_call_operand.vmem [shape: f32[1,32], index: 7, kind: input, shape index: {}]
  %s8 = inlined_call_operand.hbm [shape: bf16[32,64], index: 8, kind: input, shape index: {}]
  %s9 = inlined_call_operand.vmem [shape: f32[1,64], index: 9, kind: input, shape index: {}]
  %s10 = inlined_call_operand.hbm [shape: f32[2,8,32], index: 10, kind: output, shape index: {}]
  %s11 = sld [smem:[#allocation0]]
  $region66: #{tpu_custom_call.1} parent=0
    _
  %s13 = ssub.s32 1, %s11
  %s14 = scalar_select 0, %s13, %s11
  $region1: #{tpu_custom_call.1} parent=0
    #allocation2 [shape = 'u8[8192]{0}', space=vmem, size = 0x2000, scoped, tag = 'input window, operand 0, single buffered']
    #allocation3 [shape = 's32[1]{0}', space=sflag, size = 0x4, scoped, tag = 'scoped memory for tpu_custom_call.1']
    #allocation4 [shape = 's32[1]{0}', space=sflag, size = 0x4, scoped, tag = 'scoped memory for tpu_custom_call.1']
    #allocation5 [shape = 'u8[16384]{0}', space=vmem, size = 0x4000, scoped, tag = 'input window, operand 1, single buffered']
    #allocation6 [shape = 's32[1]{0}', space=sflag, size = 0x4, scoped, tag = 'scoped memory for tpu_custom_call.1']
    #allocation7 [shape = 'u8[8192]{0}', space=vmem, size = 0x2000, scoped, tag = 'input window, operand 6, single buffered']
    #allocation8 [shape = 'u8[8192]{0}', space=vmem, size = 0x2000, scoped, tag = 'input window, operand 8, single buffered']
    #allocation9 [shape = 's32[1]{0}', space=sflag, size = 0x4, scoped, tag = 'scoped memory for tpu_custom_call.1']
    #allocation10 [shape = 'u8[8192]{0}', space=vmem, size = 0x2000, scoped, tag = 'output window, operand 0, single buffered']
    %15 = vsyncpa [#allocation3], 0
    %16 = vsyncpa [#allocation6], 0
    %17 = vsyncpa [#allocation9], 0
    %18 = vsyncpa [#allocation4], 0
    // Predicated region
    $region2: #{tpu_custom_call.1} parent=1 // pred_check
      _
    $region3: #{tpu_custom_call.1} parent=1 // pred_check_branch
      %20 = sbr.rel (0) target = $region5
    $region4: #{tpu_custom_call.1} parent=1 // pred_region
      %22 = vsyncadd [#allocation3], 0
      %s23 = sshll.u32 %s0, 4
      %s24 = int_to_ptr.hbm [resolvable:$true] %s23
      %s25 = sshll.u32 [#allocation2], 4
      %s26 = int_to_ptr.vmem [resolvable:$true] %s25
      %31 = dma.hbm_to_vmem [thread:$0]  %s24, 256, %s26, [#allocation3], 128, 128, 8
    $region5: #{tpu_custom_call.1} parent=1 // pred_fallthru
      _
    // Predicated region
    $region6: #{tpu_custom_call.1} parent=1 // pred_check
      _
    $region7: #{tpu_custom_call.1} parent=1 // pred_check_branch
      %33 = sbr.rel (0) target = $region9
    $region8: #{tpu_custom_call.1} parent=1 // pred_region
      %35 = vsyncadd [#allocation6], 0
      %s36 = sshll.u32 %s1, 4
      %s37 = int_to_ptr.hbm [resolvable:$true] %s36
      %s38 = sshll.u32 [#allocation5], 4
      %s39 = int_to_ptr.vmem [resolvable:$true] %s38
      %44 = dma.hbm_to_vmem [thread:$0]  %s37, 512, %s39, [#allocation6], 128, 128, 8
    $region9: #{tpu_custom_call.1} parent=1 // pred_fallthru
      _
    // Predicated region
    $region10: #{tpu_custom_call.1} parent=1 // pred_check
      _
    $region11: #{tpu_custom_call.1} parent=1 // pred_check_branch
      %46 = sbr.rel (0) target = $region13
    $region12: #{tpu_custom_call.1} parent=1 // pred_region
      _
    $region13: #{tpu_custom_call.1} parent=1 // pred_fallthru
      _
    // Predicated region
    $region14: #{tpu_custom_call.1} parent=1 // pred_check
      _
    $region15: #{tpu_custom_call.1} parent=1 // pred_check_branch
      %48 = sbr.rel (0) target = $region17
    $region16: #{tpu_custom_call.1} parent=1 // pred_region
      _
    $region17: #{tpu_custom_call.1} parent=1 // pred_fallthru
      _
    // Predicated region
    $region18: #{tpu_custom_call.1} parent=1 // pred_check
      _
    $region19: #{tpu_custom_call.1} parent=1 // pred_check_branch
      %50 = sbr.rel (0) target = $region21
    $region20: #{tpu_custom_call.1} parent=1 // pred_region
      _
    $region21: #{tpu_custom_call.1} parent=1 // pred_fallthru
      _
    // Predicated region
    $region22: #{tpu_custom_call.1} parent=1 // pred_check
      _
    $region23: #{tpu_custom_call.1} parent=1 // pred_check_branch
      %52 = sbr.rel (0) target = $region25
    $region24: #{tpu_custom_call.1} parent=1 // pred_region
      _
    $region25: #{tpu_custom_call.1} parent=1 // pred_fallthru
      _
    // Predicated region
    $region26: #{tpu_custom_call.1} parent=1 // pred_check
      _
    $region27: #{tpu_custom_call.1} parent=1 // pred_check_branch
      %54 = sbr.rel (0) target = $region29
    $region28: #{tpu_custom_call.1} parent=1 // pred_region
      %56 = vsyncadd [#allocation6], 0
      %s57 = sshll.u32 %s6, 4
      %s58 = int_to_ptr.hbm [resolvable:$true] %s57
      %s59 = sshll.u32 [#allocation7], 4
      %s60 = int_to_ptr.vmem [resolvable:$true] %s59
      %65 = dma.hbm_to_vmem [thread:$0]  %s58, 256, %s60, [#allocation6], 64, 64, 4
    $region29: #{tpu_custom_call.1} parent=1 // pred_fallthru
      _
    // Predicated region
    $region30: #{tpu_custom_call.1} parent=1 // pred_check
      _
    $region31: #{tpu_custom_call.1} parent=1 // pred_check_branch
      %67 = sbr.rel (0) target = $region33
    $region32: #{tpu_custom_call.1} parent=1 // pred_region
      _
    $region33: #{tpu_custom_call.1} parent=1 // pred_fallthru
      _
    // Predicated region
    $region34: #{tpu_custom_call.1} parent=1 // pred_check
      _
    $region35: #{tpu_custom_call.1} parent=1 // pred_check_branch
      %69 = sbr.rel (0) target = $region37
    $region36: #{tpu_custom_call.1} parent=1 // pred_region
      %71 = vsyncadd [#allocation9], 0
      %s72 = sshll.u32 %s8, 4
      %s73 = int_to_ptr.hbm [resolvable:$true] %s72
      %s74 = sshll.u32 [#allocation8], 4
      %s75 = int_to_ptr.vmem [resolvable:$true] %s74
      %80 = dma.hbm_to_vmem [thread:$0]  %s73, 256, %s75, [#allocation9], 64, 64, 4
    $region37: #{tpu_custom_call.1} parent=1 // pred_fallthru
      _
    // Predicated region
    $region38: #{tpu_custom_call.1} parent=1 // pred_check
      _
    $region39: #{tpu_custom_call.1} parent=1 // pred_check_branch
      %82 = sbr.rel (0) target = $region41
    $region40: #{tpu_custom_call.1} parent=1 // pred_region
      _
    $region41: #{tpu_custom_call.1} parent=1 // pred_fallthru
      _
    // Predicated region
    $region42: #{tpu_custom_call.1} parent=1 // pred_check
      _
    $region43: #{tpu_custom_call.1} parent=1 // pred_check_branch
      %84 = sbr.rel (0) target = $region45
    $region44: #{tpu_custom_call.1} parent=1 // pred_region
      %86 = dma.done [#allocation3], 256
    $region45: #{tpu_custom_call.1} parent=1 // pred_fallthru
      _
    // Predicated region
    $region46: #{tpu_custom_call.1} parent=1 // pred_check
      _
    $region47: #{tpu_custom_call.1} parent=1 // pred_check_branch
      %88 = sbr.rel (0) target = $region49
    $region48: #{tpu_custom_call.1} parent=1 // pred_region
      %90 = dma.done [#allocation6], 512
    $region49: #{tpu_custom_call.1} parent=1 // pred_fallthru
      _
    // Predicated region
    $region50: #{tpu_custom_call.1} parent=1 // pred_check
      _
    $region51: #{tpu_custom_call.1} parent=1 // pred_check_branch
      %92 = sbr.rel (0) target = $region53
    $region52: #{tpu_custom_call.1} parent=1 // pred_region
      %94 = dma.done [#allocation6], 256
    $region53: #{tpu_custom_call.1} parent=1 // pred_fallthru
      _
    // Predicated region
    $region54: #{tpu_custom_call.1} parent=1 // pred_check
      _
    $region55: #{tpu_custom_call.1} parent=1 // pred_check_branch
      %96 = sbr.rel (0) target = $region57
    $region56: #{tpu_custom_call.1} parent=1 // pred_region
      %98 = dma.done [#allocation9], 256
    $region57: #{tpu_custom_call.1} parent=1 // pred_fallthru
      _
    %v100 = vld [vmem:[#allocation2] sm:$0xff]
    %v101 = vld [vmem:[#allocation2 + $0x8] sm:$0xff]
    %v102 = vld [vmem:[%s2] sm:$0x1]
    %v103 = vld [vmem:[%s3] sm:$0x1]
    %vm104 = vcmask 261120
    %v105 = vsel %vm104, %v100, 0.0
    %106 = vadd.xlane.f32.xlu0 %v105
    %v107 = vpop.xlane.xlu0 %106
    %v108 = vsel %vm104, %v101, 0.0
    %109 = vadd.xlane.f32.xlu0 %v108
    %v110 = vpop.xlane.xlu0 %109
    %v111 = vrcp.pop 32.0
    %v112 = vmul.f32 32.0, %v111
    %v113 = vsub.f32 1.0, %v112
    %v114 = vmul.f32 %v111, %v113
    %v115 = vadd.f32 %v111, %v114
    %vm116 = vweird.f32 %v111
    %v117 = vsel %vm116, %v111, %v115
    %v118 = vmul.f32 %v107, %v117
    %v119 = vmul.f32 %v110, %v117
    %v120 = vsub.f32 %v100, %v118
    %v121 = vsub.f32 %v101, %v119
    %v122 = vmul.f32 %v120, %v120
    %v123 = vmul.f32 %v121, %v121
    %v124 = vsel %vm104, %v122, 0.0
    %125 = vadd.xlane.f32.xlu0 %v124
    %v126 = vpop.xlane.xlu0 %125
    %v127 = vsel %vm104, %v123, 0.0
    %128 = vadd.xlane.f32.xlu0 %v127
    %v129 = vpop.xlane.xlu0 %128
    %v130 = vmul.f32 %v126, %v117
    %v131 = vmul.f32 %v129, %v117
    %v132 = vadd.f32 %v130, 1e-05
    %v133 = vadd.f32 %v131, 1e-05
    %v134 = vrsqrt.pop %v132
    %v135 = vmul.f32 %v134, %v132
    %v136 = vmul.f32 %v135, %v134
    %v137 = vmul.f32 0.5, %v136
    %v138 = vsub.f32 1.5, %v137
    %v139 = vmul.f32 %v134, %v138
    %vm140 = vweird.f32 %v132
    %vm141 = vweird.f32 %v134
    %vm142 = vmor %vm140, %vm141
    %v143 = vsel %vm142, %v134, %v139
    %v144 = vrsqrt.pop %v133
    %v145 = vmul.f32 %v144, %v133
    %v146 = vmul.f32 %v145, %v144
    %v147 = vmul.f32 0.5, %v146
    %v148 = vsub.f32 1.5, %v147
    %v149 = vmul.f32 %v144, %v148
    %vm150 = vweird.f32 %v133
    %vm151 = vweird.f32 %v144
    %vm152 = vmor %vm150, %vm151
    %v153 = vsel %vm152, %v144, %v149
    %v154 = vmul.f32 %v120, %v143
    %v155 = vmul.f32 %v121, %v153
    %v157 = vperm.slane %v102, 0
    %v159 = vmul.f32 %v154, %v157
    %v160 = vmul.f32 %v155, %v157
    %v162 = vperm.slane %v103, 0
    %v164 = vadd.f32 %v159, %v162
    %v165 = vadd.f32 %v160, %v162
    %v166 = vld [vmem:[#allocation5] sm:$0xff]
    %v167 = vld [vmem:[#allocation5 + $0x8] sm:$0xff]
    %v168 = vld [vmem:[#allocation5 + $0x10] sm:$0xff]
    %v169 = vld [vmem:[#allocation5 + $0x18] sm:$0xff]
    %v170 = vld [vmem:[%s4] sm:$0x1]
    %v171 = vld [vmem:[%s5] sm:$0x1]
    %v172 = vsel %vm104, %v166, 0.0
    %173 = vadd.xlane.f32.xlu0 %v172
    %v174 = vpop.xlane.xlu0 %173
    %v175 = vsel %vm104, %v167, 0.0
    %176 = vadd.xlane.f32.xlu0 %v175
    %v177 = vpop.xlane.xlu0 %176
    %v178 = vsel %vm104, %v168, 0.0
    %179 = vadd.xlane.f32.xlu0 %v178
    %v180 = vpop.xlane.xlu0 %179
    %v181 = vsel %vm104, %v169, 0.0
    %182 = vadd.xlane.f32.xlu0 %v181
    %v183 = vpop.xlane.xlu0 %182
    %v184 = vmul.f32 %v174, %v117
    %v185 = vmul.f32 %v177, %v117
    %v186 = vmul.f32 %v180, %v117
    %v187 = vmul.f32 %v183, %v117
    %v188 = vsub.f32 %v166, %v184
    %v189 = vsub.f32 %v167, %v185
    %v190 = vsub.f32 %v168, %v186
    %v191 = vsub.f32 %v169, %v187
    %v192 = vmul.f32 %v188, %v188
    %v193 = vmul.f32 %v189, %v189
    %v194 = vmul.f32 %v190, %v190
    %v195 = vmul.f32 %v191, %v191
    %v196 = vsel %vm104, %v192, 0.0
    %197 = vadd.xlane.f32.xlu0 %v196
    %v198 = vpop.xlane.xlu0 %197
    %v199 = vsel %vm104, %v193, 0.0
    %200 = vadd.xlane.f32.xlu0 %v199
    %v201 = vpop.xlane.xlu0 %200
    %v202 = vsel %vm104, %v194, 0.0
    %203 = vadd.xlane.f32.xlu0 %v202
    %v204 = vpop.xlane.xlu0 %203
    %v205 = vsel %vm104, %v195, 0.0
    %206 = vadd.xlane.f32.xlu0 %v205
    %v207 = vpop.xlane.xlu0 %206
    %v208 = vmul.f32 %v198, %v117
    %v209 = vmul.f32 %v201, %v117
    %v210 = vmul.f32 %v204, %v117
    %v211 = vmul.f32 %v207, %v117
    %v212 = vadd.f32 %v208, 1e-05
    %v213 = vadd.f32 %v209, 1e-05
    %v214 = vadd.f32 %v210, 1e-05
    %v215 = vadd.f32 %v211, 1e-05
    %v216 = vrsqrt.pop %v212
    %v217 = vmul.f32 %v216, %v212
    %v218 = vmul.f32 %v217, %v216
    %v219 = vmul.f32 0.5, %v218
    %v220 = vsub.f32 1.5, %v219
    %v221 = vmul.f32 %v216, %v220
    %vm222 = vweird.f32 %v212
    %vm223 = vweird.f32 %v216
    %vm224 = vmor %vm222, %vm223
    %v225 = vsel %vm224, %v216, %v221
    %v226 = vrsqrt.pop %v213
    %v227 = vmul.f32 %v226, %v213
    %v228 = vmul.f32 %v227, %v226
    %v229 = vmul.f32 0.5, %v228
    %v230 = vsub.f32 1.5, %v229
    %v231 = vmul.f32 %v226, %v230
    %vm232 = vweird.f32 %v213
    %vm233 = vweird.f32 %v226
    %vm234 = vmor %vm232, %vm233
    %v235 = vsel %vm234, %v226, %v231
    %v236 = vrsqrt.pop %v214
    %v237 = vmul.f32 %v236, %v214
    %v238 = vmul.f32 %v237, %v236
    %v239 = vmul.f32 0.5, %v238
    %v240 = vsub.f32 1.5, %v239
    %v241 = vmul.f32 %v236, %v240
    %vm242 = vweird.f32 %v214
    %vm243 = vweird.f32 %v236
    %vm244 = vmor %vm242, %vm243
    %v245 = vsel %vm244, %v236, %v241
    %v246 = vrsqrt.pop %v215
    %v247 = vmul.f32 %v246, %v215
    %v248 = vmul.f32 %v247, %v246
    %v249 = vmul.f32 0.5, %v248
    %v250 = vsub.f32 1.5, %v249
    %v251 = vmul.f32 %v246, %v250
    %vm252 = vweird.f32 %v215
    %vm253 = vweird.f32 %v246
    %vm254 = vmor %vm252, %vm253
    %v255 = vsel %vm254, %v246, %v251
    %v256 = vmul.f32 %v188, %v225
    %v257 = vmul.f32 %v189, %v235
    %v258 = vmul.f32 %v190, %v245
    %v259 = vmul.f32 %v191, %v255
    %v261 = vperm.slane %v170, 0
    %v263 = vmul.f32 %v256, %v261
    %v264 = vmul.f32 %v257, %v261
    %v265 = vmul.f32 %v258, %v261
    %v266 = vmul.f32 %v259, %v261
    %v268 = vperm.slane %v171, 0
    %v270 = vadd.f32 %v263, %v268
    %v271 = vadd.f32 %v264, %v268
    %v272 = vadd.f32 %v265, %v268
    %v273 = vadd.f32 %v266, %v268
    %v274 = vpack.c.bf16 %v165, %v164
    %v275 = vld [vmem:[#allocation7] sm:$0xf]
    %v276 = vld [vmem:[#allocation7 + $0x4] sm:$0xf]
    %v277 = vld [vmem:[#allocation7 + $0x8] sm:$0xf]
    %v278 = vld [vmem:[#allocation7 + $0xc] sm:$0xf]
    %v279 = vld [vmem:[%s7] sm:$0x1]
    %v281 = vperm.slane %v279, 0
    %v287 = vunpack.c.l.b16 %v275
    %v288 = vunpack.c.l.b16 %v276
    %v289 = vunpack.c.l.b16 %v277
    %v290 = vunpack.c.l.b16 %v278
    %v291 = vpack.c.b16 %v288, %v287
    %v292 = vpack.c.b16 %v290, %v289
    %v296 = vsel %vm104, %v274, 0
    %298 = vmatpush.bf16.msra.mxu0 0
    %299 = vmatpush.bf16.msra.mxu0 0
    %300 = vmatpush.bf16.msra.mxu0 0
    %301 = vmatpush.bf16.msra.mxu0 0
    %302 = vmatpush.bf16.msra.mxu0 0
    %303 = vmatpush.bf16.msra.mxu0 0
    %304 = vmatpush.bf16.msra.mxu0 %v292
    %305 = vmatpush.bf16.msra.mxu0 %v291
    %306 = vmatmul.bf16.gmra.mxu0 %v296
    %v307 = vpop.f32.mrf.mxu0
    %v308 = vadd.f32 %v281, %v307
    %v309 = vpop.f32.mrf.mxu0
    %v310 = vadd.f32 %v281, %v309
    %311 = vdwg.mxu0
    %v312 = vpack.c.bf16 %v271, %v270
    %v313 = vpack.c.bf16 %v273, %v272
    %v314 = vld [vmem:[#allocation8] sm:$0xf]
    %v315 = vld [vmem:[#allocation8 + $0x4] sm:$0xf]
    %v316 = vld [vmem:[#allocation8 + $0x8] sm:$0xf]
    %v317 = vld [vmem:[#allocation8 + $0xc] sm:$0xf]
    %v318 = vld [vmem:[%s9] sm:$0x1]
    %v320 = vperm.slane %v318, 0
    %v326 = vunpack.c.l.b16 %v314
    %v327 = vunpack.c.l.b16 %v315
    %v328 = vunpack.c.l.b16 %v316
    %v329 = vunpack.c.l.b16 %v317
    %v330 = vpack.c.b16 %v327, %v326
    %v331 = vpack.c.b16 %v329, %v328
    %v335 = vsel %vm104, %v312, 0
    %v338 = vsel %vm104, %v313, 0
    %340 = vmatpush.bf16.msra.mxu0 0
    %341 = vmatpush.bf16.msra.mxu0 0
    %342 = vmatpush.bf16.msra.mxu0 0
    %343 = vmatpush.bf16.msra.mxu0 0
    %344 = vmatpush.bf16.msra.mxu0 0
    %345 = vmatpush.bf16.msra.mxu0 0
    %346 = vmatpush.bf16.msra.mxu0 %v331
    %347 = vmatpush.bf16.msra.mxu0 %v330
    %348 = vmatmul.bf16.gmra.mxu0 %v335
    %v349 = vpop.f32.mrf.mxu0
    %v350 = vadd.f32 %v320, %v349
    %v351 = vpop.f32.mrf.mxu0
    %v352 = vadd.f32 %v320, %v351
    %353 = vmatmul.bf16.gmra.mxu0 %v338
    %v354 = vpop.f32.mrf.mxu0
    %v355 = vadd.f32 %v320, %v354
    %v356 = vpop.f32.mrf.mxu0
    %v357 = vadd.f32 %v320, %v356
    %358 = vdwg.mxu0
    %v359 = vpack.c.bf16 %v308, %v308
    %v360 = vpack.c.bf16 %v310, %v310
    %v361 = vpack.c.bf16 %v350, %v350
    %v362 = vpack.c.bf16 %v352, %v352
    %v363 = vpack.c.bf16 %v355, %v355
    %v364 = vpack.c.bf16 %v357, %v357
    %v367 = vunpack.c.l.b16 %v361
    %v368 = vunpack.c.l.b16 %v362
    %v369 = vpack.c.b16 %v368, %v367
    %vm370 = vcmask 64512
    %v372 = vsel %vm370, %v359, 0
    %v375 = vsel %vm370, %v369, 0
    %377 = vmatpush.bf16.xpose.msra.mxu0 0
    %378 = vmatpush.bf16.xpose.msra.mxu0 0
    %379 = vmatpush.bf16.xpose.msra.mxu0 0
    %380 = vmatpush.bf16.xpose.msra.mxu0 0
    %381 = vmatpush.bf16.xpose.msra.mxu0 0
    %382 = vmatpush.bf16.xpose.msra.mxu0 0
    %383 = vmatpush.bf16.xpose.msra.mxu0 0
    %384 = vmatpush.bf16.xpose.msra.mxu0 %v375
    %385 = vmatmul.bf16.gmra.mxu0 %v372
    %v386 = vpop.f32.mrf.mxu0
    %v387 = vadd.f32 0.0, %v386
    %v388 = vpop.f32.mrf.mxu0
    %389 = vdwg.mxu0
    %v392 = vunpack.c.l.b16 %v363
    %v393 = vunpack.c.l.b16 %v364
    %v394 = vpack.c.b16 %v393, %v392
    %v396 = vsel %vm370, %v360, 0
    %v399 = vsel %vm370, %v394, 0
    %401 = vmatpush.bf16.xpose.msra.mxu0 0
    %402 = vmatpush.bf16.xpose.msra.mxu0 0
    %403 = vmatpush.bf16.xpose.msra.mxu0 0
    %404 = vmatpush.bf16.xpose.msra.mxu0 0
    %405 = vmatpush.bf16.xpose.msra.mxu0 0
    %406 = vmatpush.bf16.xpose.msra.mxu0 0
    %407 = vmatpush.bf16.xpose.msra.mxu0 0
    %408 = vmatpush.bf16.xpose.msra.mxu0 %v399
    %409 = vmatmul.bf16.gmra.mxu0 %v396
    %v410 = vpop.f32.mrf.mxu0
    %v411 = vadd.f32 0.0, %v410
    %v412 = vpop.f32.mrf.mxu0
    %413 = vdwg.mxu0
    %vm414 = vcmask 130048
    %v415 = vsel %vm414, %v387, -inf
    %416 = vmax.xlane.f32.xlu0 %v415
    %v417 = vpop.xlane.xlu0 %416
    %v418 = vsel %vm414, %v411, -inf
    %419 = vmax.xlane.f32.xlu0 %v418
    %v420 = vpop.xlane.xlu0 %419
    %v421 = vsub.f32 %v387, %v417
    %v422 = vsub.f32 %v411, %v420
    %v423 = vmul.f32 %v421, 1.442695
    %v424 = vpow.pop %v423
    %v425 = vmul.f32 %v422, 1.442695
    %v426 = vpow.pop %v425
    %v427 = vsel %vm414, %v424, 0.0
    %428 = vadd.xlane.f32.xlu0 %v427
    %v429 = vpop.xlane.xlu0 %428
    %v430 = vsel %vm414, %v426, 0.0
    %431 = vadd.xlane.f32.xlu0 %v430
    %v432 = vpop.xlane.xlu0 %431
    %v433 = vrcp.pop %v429
    %v434 = vrcp.pop %v432
    %v435 = vmul.f32 %v424, %v433
    %v436 = vmul.f32 %v426, %v434
    %v437 = vpack.c.bf16 %v435, %v435
    %v438 = vpack.c.bf16 %v436, %v436
    %439 = vrot.lane.b32.xlu0 %v369, 96
    %v440 = vpop.permute.xlu0 %439
    %v443 = vsel %vm414, %v437, 0
    %445 = vmatpush.bf16.msra.mxu0 0
    %446 = vmatpush.bf16.msra.mxu0 0
    %447 = vmatpush.bf16.msra.mxu0 0
    %448 = vmatpush.bf16.msra.mxu0 0
    %449 = vmatpush.bf16.msra.mxu0 0
    %450 = vmatpush.bf16.msra.mxu0 0
    %451 = vmatpush.bf16.msra.mxu0 0
    %452 = vmatpush.bf16.msra.mxu0 %v440
    %453 = vmatmul.bf16.gmra.mxu0 %v443
    %v454 = vpop.f32.mrf.mxu0
    %v455 = vadd.f32 0.0, %v454
    %v456 = vpop.f32.mrf.mxu0
    %457 = vdwg.mxu0
    %458 = vrot.lane.b32.xlu0 %v394, 96
    %v459 = vpop.permute.xlu0 %458
    %v462 = vsel %vm414, %v438, 0
    %464 = vmatpush.bf16.msra.mxu0 0
    %465 = vmatpush.bf16.msra.mxu0 0
    %466 = vmatpush.bf16.msra.mxu0 0
    %467 = vmatpush.bf16.msra.mxu0 0
    %468 = vmatpush.bf16.msra.mxu0 0
    %469 = vmatpush.bf16.msra.mxu0 0
    %470 = vmatpush.bf16.msra.mxu0 0
    %471 = vmatpush.bf16.msra.mxu0 %v459
    %472 = vmatmul.bf16.gmra.mxu0 %v462
    %v473 = vpop.f32.mrf.mxu0
    %v474 = vadd.f32 0.0, %v473
    %v475 = vpop.f32.mrf.mxu0
    %476 = vdwg.mxu0
    %477 = vst.msk [vmem:[#allocation10] sm:$0xff] %vm370, %v455
    %478 = vst.msk [vmem:[#allocation10 + $0x8] sm:$0xff] %vm370, %v474
    %v480 = vunpack.c.l.b16 %v359
    %v481 = vpack.c.b16 %v480, %v480
    %482 = vrot.lane.b32.xlu0 %v481, 120
    %v483 = vpop.permute.xlu0 %482
    %484 = vrot.lane.b32.xlu0 %v369, 120
    %v485 = vpop.permute.xlu0 %484
    %v487 = vsel %vm370, %v483, 0
    %v490 = vsel %vm370, %v485, 0
    %492 = vmatpush.bf16.xpose.msra.mxu0 0
    %493 = vmatpush.bf16.xpose.msra.mxu0 0
    %494 = vmatpush.bf16.xpose.msra.mxu0 0
    %495 = vmatpush.bf16.xpose.msra.mxu0 0
    %496 = vmatpush.bf16.xpose.msra.mxu0 0
    %497 = vmatpush.bf16.xpose.msra.mxu0 0
    %498 = vmatpush.bf16.xpose.msra.mxu0 0
    %499 = vmatpush.bf16.xpose.msra.mxu0 %v490
    %500 = vmatmul.bf16.gmra.mxu0 %v487
    %v501 = vpop.f32.mrf.mxu0
    %v502 = vadd.f32 0.0, %v501
    %v503 = vpop.f32.mrf.mxu0
    %504 = vdwg.mxu0
    %v506 = vunpack.c.l.b16 %v360
    %v507 = vpack.c.b16 %v506, %v506
    %508 = vrot.lane.b32.xlu0 %v507, 120
    %v509 = vpop.permute.xlu0 %508
    %510 = vrot.lane.b32.xlu0 %v394, 120
    %v511 = vpop.permute.xlu0 %510
    %v513 = vsel %vm370, %v509, 0
    %v516 = vsel %vm370, %v511, 0
    %518 = vmatpush.bf16.xpose.msra.mxu0 0
    %519 = vmatpush.bf16.xpose.msra.mxu0 0
    %520 = vmatpush.bf16.xpose.msra.mxu0 0
    %521 = vmatpush.bf16.xpose.msra.mxu0 0
    %522 = vmatpush.bf16.xpose.msra.mxu0 0
    %523 = vmatpush.bf16.xpose.msra.mxu0 0
    %524 = vmatpush.bf16.xpose.msra.mxu0 0
    %525 = vmatpush.bf16.xpose.msra.mxu0 %v516
    %526 = vmatmul.bf16.gmra.mxu0 %v513
    %v527 = vpop.f32.mrf.mxu0
    %v528 = vadd.f32 0.0, %v527
    %v529 = vpop.f32.mrf.mxu0
    %530 = vdwg.mxu0
    %v531 = vsel %vm414, %v502, -inf
    %532 = vmax.xlane.f32.xlu0 %v531
    %v533 = vpop.xlane.xlu0 %532
    %v534 = vsel %vm414, %v528, -inf
    %535 = vmax.xlane.f32.xlu0 %v534
    %v536 = vpop.xlane.xlu0 %535
    %v537 = vsub.f32 %v502, %v533
    %v538 = vsub.f32 %v528, %v536
    %v539 = vmul.f32 %v537, 1.442695
    %v540 = vpow.pop %v539
    %v541 = vmul.f32 %v538, 1.442695
    %v542 = vpow.pop %v541
    %v543 = vsel %vm414, %v540, 0.0
    %544 = vadd.xlane.f32.xlu0 %v543
    %v545 = vpop.xlane.xlu0 %544
    %v546 = vsel %vm414, %v542, 0.0
    %547 = vadd.xlane.f32.xlu0 %v546
    %v548 = vpop.xlane.xlu0 %547
    %v549 = vrcp.pop %v545
    %v550 = vrcp.pop %v548
    %v551 = vmul.f32 %v540, %v549
    %v552 = vmul.f32 %v542, %v550
    %v553 = vpack.c.bf16 %v551, %v551
    %v554 = vpack.c.bf16 %v552, %v552
    %555 = vrot.lane.b32.xlu0 %v369, 88
    %v556 = vpop.permute.xlu0 %555
    %v559 = vsel %vm414, %v553, 0
    %561 = vmatpush.bf16.msra.mxu0 0
    %562 = vmatpush.bf16.msra.mxu0 0
    %563 = vmatpush.bf16.msra.mxu0 0
    %564 = vmatpush.bf16.msra.mxu0 0
    %565 = vmatpush.bf16.msra.mxu0 0
    %566 = vmatpush.bf16.msra.mxu0 0
    %567 = vmatpush.bf16.msra.mxu0 0
    %568 = vmatpush.bf16.msra.mxu0 %v556
    %569 = vmatmul.bf16.gmra.mxu0 %v559
    %v570 = vpop.f32.mrf.mxu0
    %v571 = vadd.f32 0.0, %v570
    %v572 = vpop.f32.mrf.mxu0
    %573 = vdwg.mxu0
    %574 = vrot.lane.b32.xlu0 %v394, 88
    %v575 = vpop.permute.xlu0 %574
    %v578 = vsel %vm414, %v554, 0
    %580 = vmatpush.bf16.msra.mxu0 0
    %581 = vmatpush.bf16.msra.mxu0 0
    %582 = vmatpush.bf16.msra.mxu0 0
    %583 = vmatpush.bf16.msra.mxu0 0
    %584 = vmatpush.bf16.msra.mxu0 0
    %585 = vmatpush.bf16.msra.mxu0 0
    %586 = vmatpush.bf16.msra.mxu0 0
    %587 = vmatpush.bf16.msra.mxu0 %v575
    %588 = vmatmul.bf16.gmra.mxu0 %v578
    %v589 = vpop.f32.mrf.mxu0
    %v590 = vadd.f32 0.0, %v589
    %v591 = vpop.f32.mrf.mxu0
    %592 = vdwg.mxu0
    %595 = vrot.lane.b32.xlu0 %v571, 8
    %v596 = vpop.permute.xlu0 %595
    %597 = vrot.lane.b32.xlu0 %v590, 8
    %v598 = vpop.permute.xlu0 %597
    %vm601 = vcmask 130112
    %602 = vst.msk [vmem:[#allocation10] sm:$0xff] %vm601, %v596
    %603 = vst.msk [vmem:[#allocation10 + $0x8] sm:$0xff] %vm601, %v598
    %604 = vrot.lane.b32.xlu0 %v481, 112
    %v605 = vpop.permute.xlu0 %604
    %606 = vrot.lane.b32.xlu0 %v369, 112
    %v607 = vpop.permute.xlu0 %606
    %v609 = vsel %vm370, %v605, 0
    %v612 = vsel %vm370, %v607, 0
    %614 = vmatpush.bf16.xpose.msra.mxu0 0
    %615 = vmatpush.bf16.xpose.msra.mxu0 0
    %616 = vmatpush.bf16.xpose.msra.mxu0 0
    %617 = vmatpush.bf16.xpose.msra.mxu0 0
    %618 = vmatpush.bf16.xpose.msra.mxu0 0
    %619 = vmatpush.bf16.xpose.msra.mxu0 0
    %620 = vmatpush.bf16.xpose.msra.mxu0 0
    %621 = vmatpush.bf16.xpose.msra.mxu0 %v612
    %622 = vmatmul.bf16.gmra.mxu0 %v609
    %v623 = vpop.f32.mrf.mxu0
    %v624 = vadd.f32 0.0, %v623
    %v625 = vpop.f32.mrf.mxu0
    %626 = vdwg.mxu0
    %627 = vrot.lane.b32.xlu0 %v507, 112
    %v628 = vpop.permute.xlu0 %627
    %629 = vrot.lane.b32.xlu0 %v394, 112
    %v630 = vpop.permute.xlu0 %629
    %v632 = vsel %vm370, %v628, 0
    %v635 = vsel %vm370, %v630, 0
    %637 = vmatpush.bf16.xpose.msra.mxu0 0
    %638 = vmatpush.bf16.xpose.msra.mxu0 0
    %639 = vmatpush.bf16.xpose.msra.mxu0 0
    %640 = vmatpush.bf16.xpose.msra.mxu0 0
    %641 = vmatpush.bf16.xpose.msra.mxu0 0
    %642 = vmatpush.bf16.xpose.msra.mxu0 0
    %643 = vmatpush.bf16.xpose.msra.mxu0 0
    %644 = vmatpush.bf16.xpose.msra.mxu0 %v635
    %645 = vmatmul.bf16.gmra.mxu0 %v632
    %v646 = vpop.f32.mrf.mxu0
    %v647 = vadd.f32 0.0, %v646
    %v648 = vpop.f32.mrf.mxu0
    %649 = vdwg.mxu0
    %v650 = vsel %vm414, %v624, -inf
    %651 = vmax.xlane.f32.xlu0 %v650
    %v652 = vpop.xlane.xlu0 %651
    %v653 = vsel %vm414, %v647, -inf
    %654 = vmax.xlane.f32.xlu0 %v653
    %v655 = vpop.xlane.xlu0 %654
    %v656 = vsub.f32 %v624, %v652
    %v657 = vsub.f32 %v647, %v655
    %v658 = vmul.f32 %v656, 1.442695
    %v659 = vpow.pop %v658
    %v660 = vmul.f32 %v657, 1.442695
    %v661 = vpow.pop %v660
    %v662 = vsel %vm414, %v659, 0.0
    %663 = vadd.xlane.f32.xlu0 %v662
    %v664 = vpop.xlane.xlu0 %663
    %v665 = vsel %vm414, %v661, 0.0
    %666 = vadd.xlane.f32.xlu0 %v665
    %v667 = vpop.xlane.xlu0 %666
    %v668 = vrcp.pop %v664
    %v669 = vrcp.pop %v667
    %v670 = vmul.f32 %v659, %v668
    %v671 = vmul.f32 %v661, %v669
    %v672 = vpack.c.bf16 %v670, %v670
    %v673 = vpack.c.bf16 %v671, %v671
    %674 = vrot.lane.b32.xlu0 %v369, 80
    %v675 = vpop.permute.xlu0 %674
    %v678 = vsel %vm414, %v672, 0
    %680 = vmatpush.bf16.msra.mxu0 0
    %681 = vmatpush.bf16.msra.mxu0 0
    %682 = vmatpush.bf16.msra.mxu0 0
    %683 = vmatpush.bf16.msra.mxu0 0
    %684 = vmatpush.bf16.msra.mxu0 0
    %685 = vmatpush.bf16.msra.mxu0 0
    %686 = vmatpush.bf16.msra.mxu0 0
    %687 = vmatpush.bf16.msra.mxu0 %v675
    %688 = vmatmul.bf16.gmra.mxu0 %v678
    %v689 = vpop.f32.mrf.mxu0
    %v690 = vadd.f32 0.0, %v689
    %v691 = vpop.f32.mrf.mxu0
    %692 = vdwg.mxu0
    %693 = vrot.lane.b32.xlu0 %v394, 80
    %v694 = vpop.permute.xlu0 %693
    %v697 = vsel %vm414, %v673, 0
    %699 = vmatpush.bf16.msra.mxu0 0
    %700 = vmatpush.bf16.msra.mxu0 0
    %701 = vmatpush.bf16.msra.mxu0 0
    %702 = vmatpush.bf16.msra.mxu0 0
    %703 = vmatpush.bf16.msra.mxu0 0
    %704 = vmatpush.bf16.msra.mxu0 0
    %705 = vmatpush.bf16.msra.mxu0 0
    %706 = vmatpush.bf16.msra.mxu0 %v694
    %707 = vmatmul.bf16.gmra.mxu0 %v697
    %v708 = vpop.f32.mrf.mxu0
    %v709 = vadd.f32 0.0, %v708
    %v710 = vpop.f32.mrf.mxu0
    %711 = vdwg.mxu0
    %714 = vrot.lane.b32.xlu0 %v690, 16
    %v715 = vpop.permute.xlu0 %714
    %716 = vrot.lane.b32.xlu0 %v709, 16
    %v717 = vpop.permute.xlu0 %716
    %vm720 = vcmask 195712
    %721 = vst.msk [vmem:[#allocation10] sm:$0xff] %vm720, %v715
    %722 = vst.msk [vmem:[#allocation10 + $0x8] sm:$0xff] %vm720, %v717
    %723 = vrot.lane.b32.xlu0 %v481, 104
    %v724 = vpop.permute.xlu0 %723
    %725 = vrot.lane.b32.xlu0 %v369, 104
    %v726 = vpop.permute.xlu0 %725
    %v728 = vsel %vm370, %v724, 0
    %v731 = vsel %vm370, %v726, 0
    %733 = vmatpush.bf16.xpose.msra.mxu0 0
    %734 = vmatpush.bf16.xpose.msra.mxu0 0
    %735 = vmatpush.bf16.xpose.msra.mxu0 0
    %736 = vmatpush.bf16.xpose.msra.mxu0 0
    %737 = vmatpush.bf16.xpose.msra.mxu0 0
    %738 = vmatpush.bf16.xpose.msra.mxu0 0
    %739 = vmatpush.bf16.xpose.msra.mxu0 0
    %740 = vmatpush.bf16.xpose.msra.mxu0 %v731
    %741 = vmatmul.bf16.gmra.mxu0 %v728
    %v742 = vpop.f32.mrf.mxu0
    %v743 = vadd.f32 0.0, %v742
    %v744 = vpop.f32.mrf.mxu0
    %745 = vdwg.mxu0
    %746 = vrot.lane.b32.xlu0 %v507, 104
    %v747 = vpop.permute.xlu0 %746
    %748 = vrot.lane.b32.xlu0 %v394, 104
    %v749 = vpop.permute.xlu0 %748
    %v751 = vsel %vm370, %v747, 0
    %v754 = vsel %vm370, %v749, 0
    %756 = vmatpush.bf16.xpose.msra.mxu0 0
    %757 = vmatpush.bf16.xpose.msra.mxu0 0
    %758 = vmatpush.bf16.xpose.msra.mxu0 0
    %759 = vmatpush.bf16.xpose.msra.mxu0 0
    %760 = vmatpush.bf16.xpose.msra.mxu0 0
    %761 = vmatpush.bf16.xpose.msra.mxu0 0
    %762 = vmatpush.bf16.xpose.msra.mxu0 0
    %763 = vmatpush.bf16.xpose.msra.mxu0 %v754
    %764 = vmatmul.bf16.gmra.mxu0 %v751
    %v765 = vpop.f32.mrf.mxu0
    %v766 = vadd.f32 0.0, %v765
    %v767 = vpop.f32.mrf.mxu0
    %768 = vdwg.mxu0
    %v769 = vsel %vm414, %v743, -inf
    %770 = vmax.xlane.f32.xlu0 %v769
    %v771 = vpop.xlane.xlu0 %770
    %v772 = vsel %vm414, %v766, -inf
    %773 = vmax.xlane.f32.xlu0 %v772
    %v774 = vpop.xlane.xlu0 %773
    %v775 = vsub.f32 %v743, %v771
    %v776 = vsub.f32 %v766, %v774
    %v777 = vmul.f32 %v775, 1.442695
    %v778 = vpow.pop %v777
    %v779 = vmul.f32 %v776, 1.442695
    %v780 = vpow.pop %v779
    %v781 = vsel %vm414, %v778, 0.0
    %782 = vadd.xlane.f32.xlu0 %v781
    %v783 = vpop.xlane.xlu0 %782
    %v784 = vsel %vm414, %v780, 0.0
    %785 = vadd.xlane.f32.xlu0 %v784
    %v786 = vpop.xlane.xlu0 %785
    %v787 = vrcp.pop %v783
    %v788 = vrcp.pop %v786
    %v789 = vmul.f32 %v778, %v787
    %v790 = vmul.f32 %v780, %v788
    %v791 = vpack.c.bf16 %v789, %v789
    %v792 = vpack.c.bf16 %v790, %v790
    %793 = vrot.lane.b32.xlu0 %v369, 72
    %v794 = vpop.permute.xlu0 %793
    %v797 = vsel %vm414, %v791, 0
    %799 = vmatpush.bf16.msra.mxu0 0
    %800 = vmatpush.bf16.msra.mxu0 0
    %801 = vmatpush.bf16.msra.mxu0 0
    %802 = vmatpush.bf16.msra.mxu0 0
    %803 = vmatpush.bf16.msra.mxu0 0
    %804 = vmatpush.bf16.msra.mxu0 0
    %805 = vmatpush.bf16.msra.mxu0 0
    %806 = vmatpush.bf16.msra.mxu0 %v794
    %807 = vmatmul.bf16.gmra.mxu0 %v797
    %v808 = vpop.f32.mrf.mxu0
    %v809 = vadd.f32 0.0, %v808
    %v810 = vpop.f32.mrf.mxu0
    %811 = vdwg.mxu0
    %812 = vrot.lane.b32.xlu0 %v394, 72
    %v813 = vpop.permute.xlu0 %812
    %v816 = vsel %vm414, %v792, 0
    %818 = vmatpush.bf16.msra.mxu0 0
    %819 = vmatpush.bf16.msra.mxu0 0
    %820 = vmatpush.bf16.msra.mxu0 0
    %821 = vmatpush.bf16.msra.mxu0 0
    %822 = vmatpush.bf16.msra.mxu0 0
    %823 = vmatpush.bf16.msra.mxu0 0
    %824 = vmatpush.bf16.msra.mxu0 0
    %825 = vmatpush.bf16.msra.mxu0 %v813
    %826 = vmatmul.bf16.gmra.mxu0 %v816
    %v827 = vpop.f32.mrf.mxu0
    %v828 = vadd.f32 0.0, %v827
    %v829 = vpop.f32.mrf.mxu0
    %830 = vdwg.mxu0
    %833 = vrot.lane.b32.xlu0 %v809, 24
    %v834 = vpop.permute.xlu0 %833
    %835 = vrot.lane.b32.xlu0 %v828, 24
    %v836 = vpop.permute.xlu0 %835
    %vm839 = vcmask 261312
    %840 = vst.msk [vmem:[#allocation10] sm:$0xff] %vm839, %v834
    %841 = vst.msk [vmem:[#allocation10 + $0x8] sm:$0xff] %vm839, %v836
    // Predicated region
    $region58: #{tpu_custom_call.1} parent=1 // pred_check
      _
    $region59: #{tpu_custom_call.1} parent=1 // pred_check_branch
      %843 = sbr.rel (0) target = $region61
    $region60: #{tpu_custom_call.1} parent=1 // pred_region
      %845 = vsyncadd [#allocation4], 0
      %s846 = sshll.u32 [#allocation10], 4
      %s847 = int_to_ptr.vmem [resolvable:$true] %s846
      %s848 = sshll.u32 %s10, 4
      %s849 = int_to_ptr.hbm [resolvable:$true] %s848
      %854 = dma.vmem_to_hbm [thread:$0]  %s847, 256, %s849, [#allocation4], 128, 128, 8
    $region61: #{tpu_custom_call.1} parent=1 // pred_fallthru
      _
    // Predicated region
    $region62: #{tpu_custom_call.1} parent=1 // pred_check
      _
    $region63: #{tpu_custom_call.1} parent=1 // pred_check_branch
      %856 = sbr.rel (0) target = $region65
    $region64: #{tpu_custom_call.1} parent=1 // pred_region
      %858 = dma.done [#allocation4], 256
    $region65: #{tpu_custom_call.1} parent=1 // pred_fallthru
      _
    %859 = vsyncpa [#allocation3], 1
    %860 = vsyncpa [#allocation6], 1
    %861 = vsyncpa [#allocation9], 1
    %862 = vsyncpa [#allocation4], 1

</llo_original>
